<compile_context>
chip_gen: v5e
topology: v5e:2x2
jax: 0.10.0
libtpu: 0.0.40
codegen_flags: <defaults>
</compile_context>

<pallas_src>
import math

import jax
import jax.numpy as jnp
from jax import lax
from jax.experimental import pallas as pl
from jax.experimental.pallas import tpu as pltpu  # noqa: F401  (kept for TPU backend)

BATCH = 2
CHANNELS = 4
HEIGHT = 16
WIDTH = 16
EMB_DIM = HEIGHT * WIDTH          # 256 == dim == dim_head == context_dim
N_TIME_STEPS = 8

SQRT_HALF = 1.0 / math.sqrt(2.0)
GRN_EPS = 1e-6


def _gelu_exact(x):
    # nn.GELU() default (approximate='none'): 0.5 * x * (1 + erf(x / sqrt(2)))
    return 0.5 * x * (1.0 + lax.erf(x * SQRT_HALF))


# -----------------------------------------------------------------------------
# Single fused kernel, one invocation for the whole batch.
#   x    : (B*C, D) f32   raw input rows (the residual identity), lane-dense
#   t    : (B,   D) f32   time-embedding tokens
#   wv,wo: (D,   D) bf16  to_v / to_out weights (transposed), MXU-native
#   misc : (8,   D) f32   row 0 = to_out bias; rows 1..C = [grn_g, grn_b, ls_g]
#   o    : (B*C, D) f32
# -----------------------------------------------------------------------------
def _timestep_mixing_kernel(x_ref, t_ref, wv_ref, wo_ref, misc_ref, o_ref):
    B = t_ref.shape[0]
    C = x_ref.shape[0] // B

    misc = misc_ref[...]
    bo = misc[0:1, :]                 # (1, D) to_out bias
    grn_g = misc[1:1 + C, 0:1]        # (C, 1)
    grn_b = misc[1:1 + C, 1:2]        # (C, 1)
    ls_g = misc[1:1 + C, 2:3]         # (C, 1)

    # Cross-attention with heads=1 and a single context token: softmax over the
    # lone key is identically 1, so every channel's attention output equals
    # to_out(to_v(t_emb)).  GroupNorm / to_q / to_k are mathematically dead.
    t = t_ref[...]                                                    # (B, D)
    v = jnp.dot(t.astype(jnp.bfloat16), wv_ref[...],
                preferred_element_type=jnp.float32)                   # (B, D)
    y = jnp.dot(v.astype(jnp.bfloat16), wo_ref[...],
                preferred_element_type=jnp.float32) + bo              # (B, D)
    y = _gelu_exact(y)                                                # act_1

    # GRN: all C channel rows equal y[b], so Gx == mean_C(Gx) per batch and
    #   Nx = Gx / (Gx + eps) exactly.
    gx = jnp.sqrt(jnp.sum(y * y, axis=1, keepdims=True))              # (B, 1)
    nx = gx * pl.reciprocal(gx + GRN_EPS, approx=True)                # (B, 1)

    # Per-batch (C, D) tile: GRN affine + LayerScale + residual with raw input.
    #   out[b,c,:] = ls_g[c] * (grn_g[c]*nx[b]*y[b] + grn_b[c] + y[b]) + x[b,c,:]
    for b in range(B):                       # static unroll, B is tiny
        rows = pl.ds(b * C, C)
        y_b = y[b:b + 1, :]                                           # (1, D)
        coef = ls_g * (grn_g * nx[b:b + 1, :] + 1.0)                  # (C, 1)
        o_ref[rows, :] = (coef * y_b + ls_g * grn_b
                          + x_ref[rows, :]).astype(o_ref.dtype)


def timestep_mixing_forward(params, x, t_emb):
    B, C, H, W = x.shape
    D = H * W
    x2 = x.reshape(B * C, D).astype(jnp.float32)      # (8, 256) lane-dense rows
    t2 = t_emb.reshape(B, D).astype(jnp.float32)      # (2, 256)
    misc = params["misc"]

    out = pl.pallas_call(
        _timestep_mixing_kernel,
        out_shape=jax.ShapeDtypeStruct((B * C, D), jnp.float32),
        grid=(1,),                                     # single step; no v7x weight duplication
        in_specs=[
            pl.BlockSpec((B * C, D), lambda i: (0, 0)),        # x rows
            pl.BlockSpec((B, D), lambda i: (0, 0)),            # t_emb tokens
            pl.BlockSpec((D, D), lambda i: (0, 0)),            # Wv^T (bf16)
            pl.BlockSpec((D, D), lambda i: (0, 0)),            # Wout^T (bf16)
            pl.BlockSpec(misc.shape, lambda i: (0, 0)),        # bias + per-channel params
        ],
        out_specs=pl.BlockSpec((B * C, D), lambda i: (0, 0)),
    )(x2, t2, params["wv_t"], params["wo_t"], misc)

    return out.reshape(B, C, H, W)


# -----------------------------------------------------------------------------
# Deterministic parameter setup (shapes mirror the PyTorch module parameters).
# -----------------------------------------------------------------------------
def init_params(key, *, channels=CHANNELS, emb_dim=EMB_DIM,
                n_time_steps=N_TIME_STEPS):
    keys = jax.random.split(key, 11)
    w_scale = 1.0 / math.sqrt(emb_dim)

    # nn.Linear weights are stored (out, in); the kernel consumes transposes so
    # every projection is rows @ (D, D).  to_q / to_k and the GroupNorm affine
    # are created for module parity but are mathematically dead (single-token
    # softmax == 1) and never shipped to the kernel.
    wq = w_scale * jax.random.normal(keys[0], (emb_dim, emb_dim), jnp.float32)
    wk = w_scale * jax.random.normal(keys[1], (emb_dim, emb_dim), jnp.float32)
    wv = w_scale * jax.random.normal(keys[2], (emb_dim, emb_dim), jnp.float32)
    wo = w_scale * jax.random.normal(keys[3], (emb_dim, emb_dim), jnp.float32)
    bo = 0.05 * jax.random.normal(keys[4], (emb_dim,), jnp.float32)

    gn_w = 1.0 + 0.1 * jax.random.normal(keys[5], (channels,), jnp.float32)
    gn_b = 0.05 * jax.random.normal(keys[6], (channels,), jnp.float32)
    # GRN gamma/beta init to zero and LayerScale gamma to 1e-5 in PyTorch; small
    # random values here so the whole compute path is exercised numerically.
    grn_g = 0.5 * jax.random.normal(keys[7], (channels,), jnp.float32)
    grn_b = 0.1 * jax.random.normal(keys[8], (channels,), jnp.float32)
    ls_g = 0.5 + 0.1 * jax.random.normal(keys[9], (channels,), jnp.float32)

    time_emb = 0.5 * jax.random.normal(keys[10], (n_time_steps, emb_dim),
                                       jnp.float32)

    # One lane-dense (8, D) block: row 0 = to_out bias, rows 1..C hold
    # [grn_gamma, grn_beta, layerscale_gamma] in lanes 0..2.
    rows = max(8, channels + 1)
    misc = jnp.zeros((rows, emb_dim), jnp.float32)
    misc = misc.at[0, :].set(bo)
    misc = misc.at[1:1 + channels, 0].set(grn_g)
    misc = misc.at[1:1 + channels, 1].set(grn_b)
    misc = misc.at[1:1 + channels, 2].set(ls_g)

    return {
        # live kernel operands; weights stored bf16 (kernel is weight-DMA bound)
        "wv_t": wv.T.astype(jnp.bfloat16),
        "wo_t": wo.T.astype(jnp.bfloat16),
        "misc": misc,
        "time_emb": time_emb,
        # mathematically dead params, kept only for module parity
        "wq": wq, "wk": wk, "gn_w": gn_w, "gn_b": gn_b,
    }


if __name__ == "__main__":
    key = jax.random.PRNGKey(0)
    pkey, xkey, tkey = jax.random.split(key, 3)
    params = init_params(pkey)

    x = jax.random.normal(xkey, (BATCH, CHANNELS, HEIGHT, WIDTH), jnp.float32)
    t_idx = jax.random.randint(tkey, (BATCH,), 0, N_TIME_STEPS)
    # The module owns time_embedding but forward() receives the already-embedded
    # time step; reproduce that caller-side lookup here (plain JAX gather).
    t_emb = params["time_emb"][t_idx]                    # (B, H*W)

    out = jax.jit(timestep_mixing_forward)(params, x, t_emb)
    out = jax.block_until_ready(out)

    assert out.shape == (BATCH, CHANNELS, HEIGHT, WIDTH)
    assert bool(jnp.all(jnp.isfinite(out)))
    print("KERNEL_OK")
</pallas_src>

<mosaic_0001>
module attributes {stable_mosaic.version = 11 : i64} {
  func.func @_timestep_mixing_kernel(%arg0: i32, %arg1: memref<8x256xf32, #tpu.memory_space<vmem>>, %arg2: memref<2x256xf32, #tpu.memory_space<vmem>>, %arg3: memref<256x256xbf16, #tpu.memory_space<vmem>>, %arg4: memref<256x256xbf16, #tpu.memory_space<vmem>>, %arg5: memref<8x256xf32, #tpu.memory_space<vmem>>, %arg6: memref<8x256xf32, #tpu.memory_space<vmem>>) attributes {dimension_semantics = [#tpu.dimension_semantics<arbitrary>], iteration_bounds = array<i64: 1>, scalar_prefetch = 0 : i64, scratch_operands = 0 : i64, tpu.core_type = #tpu.core_type<tc>, window_params = [{pipeline_mode = #tpu.pipeline_mode<synchronous>, transform_indices = @transform_0, window_bounds = array<i64: 8, 256>}, {pipeline_mode = #tpu.pipeline_mode<synchronous>, transform_indices = @transform_1, window_bounds = array<i64: 2, 256>}, {pipeline_mode = #tpu.pipeline_mode<synchronous>, transform_indices = @transform_2, window_bounds = array<i64: 256, 256>}, {pipeline_mode = #tpu.pipeline_mode<synchronous>, transform_indices = @transform_3, window_bounds = array<i64: 256, 256>}, {pipeline_mode = #tpu.pipeline_mode<synchronous>, transform_indices = @transform_4, window_bounds = array<i64: 8, 256>}, {pipeline_mode = #tpu.pipeline_mode<synchronous>, transform_indices = @transform_5, window_bounds = array<i64: 8, 256>}]} {
    %c0 = arith.constant 0 : index
    %c0_0 = arith.constant 0 : index
    %0 = vector.load %arg5[%c0, %c0_0] : memref<8x256xf32, #tpu.memory_space<vmem>>, vector<8x256xf32>
    %1 = vector.extract_strided_slice %0 {offsets = [0, 0], sizes = [1, 256], strides = [1, 1]} : vector<8x256xf32> to vector<1x256xf32>
    %2 = vector.extract_strided_slice %0 {offsets = [1, 0], sizes = [4, 1], strides = [1, 1]} : vector<8x256xf32> to vector<4x1xf32>
    %3 = vector.extract_strided_slice %0 {offsets = [1, 1], sizes = [4, 1], strides = [1, 1]} : vector<8x256xf32> to vector<4x1xf32>
    %4 = vector.extract_strided_slice %0 {offsets = [1, 2], sizes = [4, 1], strides = [1, 1]} : vector<8x256xf32> to vector<4x1xf32>
    %c0_1 = arith.constant 0 : index
    %c0_2 = arith.constant 0 : index
    %5 = vector.load %arg2[%c0_1, %c0_2] : memref<2x256xf32, #tpu.memory_space<vmem>>, vector<2x256xf32>
    %6 = arith.truncf %5 : vector<2x256xf32> to vector<2x256xbf16>
    %c0_3 = arith.constant 0 : index
    %c0_4 = arith.constant 0 : index
    %7 = vector.load %arg3[%c0_3, %c0_4] : memref<256x256xbf16, #tpu.memory_space<vmem>>, vector<256x256xbf16>
    %cst = arith.constant dense<0.000000e+00> : vector<2x256xf32>
    %8 = tpu.matmul %6, %7, %cst {dimension_numbers = #tpu.dot_dimension_numbers<[1], [0], [0], [1], [0, 0, 1, 1], [], []>} : vector<2x256xbf16>, vector<256x256xbf16>, vector<2x256xf32> -> vector<2x256xf32>
    %9 = arith.truncf %8 : vector<2x256xf32> to vector<2x256xbf16>
    %c0_5 = arith.constant 0 : index
    %c0_6 = arith.constant 0 : index
    %10 = vector.load %arg4[%c0_5, %c0_6] : memref<256x256xbf16, #tpu.memory_space<vmem>>, vector<256x256xbf16>
    %cst_7 = arith.constant dense<0.000000e+00> : vector<2x256xf32>
    %11 = tpu.matmul %9, %10, %cst_7 {dimension_numbers = #tpu.dot_dimension_numbers<[1], [0], [0], [1], [0, 0, 1, 1], [], []>} : vector<2x256xbf16>, vector<256x256xbf16>, vector<2x256xf32> -> vector<2x256xf32>
    %12 = vector.broadcast %1 : vector<1x256xf32> to vector<2x256xf32>
    %13 = arith.addf %11, %12 : vector<2x256xf32>
    %cst_8 = arith.constant 5.000000e-01 : f32
    %14 = vector.broadcast %cst_8 : f32 to vector<2x256xf32>
    %15 = arith.mulf %14, %13 : vector<2x256xf32>
    %cst_9 = arith.constant 0.707106769 : f32
    %16 = vector.broadcast %cst_9 : f32 to vector<2x256xf32>
    %17 = arith.mulf %13, %16 : vector<2x256xf32>
    %18 = math.erf %17 : vector<2x256xf32>
    %cst_10 = arith.constant 1.000000e+00 : f32
    %19 = vector.broadcast %cst_10 : f32 to vector<2x256xf32>
    %20 = arith.addf %19, %18 : vector<2x256xf32>
    %21 = arith.mulf %15, %20 : vector<2x256xf32>
    %22 = arith.mulf %21, %21 : vector<2x256xf32>
    %cst_11 = arith.constant dense<0.000000e+00> : vector<2xf32>
    %23 = vector.multi_reduction <add>, %22, %cst_11 [1] : vector<2x256xf32> to vector<2xf32>
    %24 = vector.shape_cast %23 : vector<2xf32> to vector<2x1xf32>
    %25 = math.sqrt %24 : vector<2x1xf32>
    %cst_12 = arith.constant 9.99999997E-7 : f32
    %26 = vector.broadcast %cst_12 : f32 to vector<2x1xf32>
    %27 = arith.addf %25, %26 : vector<2x1xf32>
    %28 = tpu.reciprocal %27 {approx = true} : vector<2x1xf32> -> vector<2x1xf32>
    %29 = arith.mulf %25, %28 : vector<2x1xf32>
    %30 = vector.extract_strided_slice %21 {offsets = [0, 0], sizes = [1, 256], strides = [1, 1]} : vector<2x256xf32> to vector<1x256xf32>
    %31 = vector.extract_strided_slice %29 {offsets = [0, 0], sizes = [1, 1], strides = [1, 1]} : vector<2x1xf32> to vector<1x1xf32>
    %32 = vector.broadcast %31 : vector<1x1xf32> to vector<4x1xf32>
    %33 = arith.mulf %2, %32 : vector<4x1xf32>
    %cst_13 = arith.constant 1.000000e+00 : f32
    %34 = vector.broadcast %cst_13 : f32 to vector<4x1xf32>
    %35 = arith.addf %33, %34 : vector<4x1xf32>
    %36 = arith.mulf %4, %35 : vector<4x1xf32>
    %37 = vector.broadcast %36 : vector<4x1xf32> to vector<4x256xf32>
    %38 = vector.broadcast %30 : vector<1x256xf32> to vector<4x256xf32>
    %39 = arith.mulf %37, %38 : vector<4x256xf32>
    %40 = arith.mulf %4, %3 : vector<4x1xf32>
    %41 = vector.broadcast %40 : vector<4x1xf32> to vector<4x256xf32>
    %42 = arith.addf %39, %41 : vector<4x256xf32>
    %c0_14 = arith.constant 0 : index
    %c0_15 = arith.constant 0 : index
    %43 = vector.load %arg1[%c0_14, %c0_15] : memref<8x256xf32, #tpu.memory_space<vmem>>, vector<4x256xf32>
    %44 = arith.addf %42, %43 : vector<4x256xf32>
    %c0_16 = arith.constant 0 : index
    %c0_17 = arith.constant 0 : index
    %45 = vector.load %arg6[%c0_16, %c0_17] : memref<8x256xf32, #tpu.memory_space<vmem>>, vector<4x256xf32>
    tpu.vector_store %arg6[%c0_16, %c0_17], %44 {strides = array<i32>} : memref<8x256xf32, #tpu.memory_space<vmem>>, vector<4x256xf32>,
    %46 = vector.extract_strided_slice %21 {offsets = [1, 0], sizes = [1, 256], strides = [1, 1]} : vector<2x256xf32> to vector<1x256xf32>
    %47 = vector.extract_strided_slice %29 {offsets = [1, 0], sizes = [1, 1], strides = [1, 1]} : vector<2x1xf32> to vector<1x1xf32>
    %48 = vector.broadcast %47 : vector<1x1xf32> to vector<4x1xf32>
    %49 = arith.mulf %2, %48 : vector<4x1xf32>
    %cst_18 = arith.constant 1.000000e+00 : f32
    %50 = vector.broadcast %cst_18 : f32 to vector<4x1xf32>
    %51 = arith.addf %49, %50 : vector<4x1xf32>
    %52 = arith.mulf %4, %51 : vector<4x1xf32>
    %53 = vector.broadcast %52 : vector<4x1xf32> to vector<4x256xf32>
    %54 = vector.broadcast %46 : vector<1x256xf32> to vector<4x256xf32>
    %55 = arith.mulf %53, %54 : vector<4x256xf32>
    %56 = arith.mulf %4, %3 : vector<4x1xf32>
    %57 = vector.broadcast %56 : vector<4x1xf32> to vector<4x256xf32>
    %58 = arith.addf %55, %57 : vector<4x256xf32>
    %c4 = arith.constant 4 : index
    %c0_19 = arith.constant 0 : index
    %59 = vector.load %arg1[%c4, %c0_19] : memref<8x256xf32, #tpu.memory_space<vmem>>, vector<4x256xf32>
    %60 = arith.addf %58, %59 : vector<4x256xf32>
    %c4_20 = arith.constant 4 : index
    %c0_21 = arith.constant 0 : index
    %61 = vector.load %arg6[%c4_20, %c0_21] : memref<8x256xf32, #tpu.memory_space<vmem>>, vector<4x256xf32>
    tpu.vector_store %arg6[%c4_20, %c0_21], %60 {strides = array<i32>} : memref<8x256xf32, #tpu.memory_space<vmem>>, vector<4x256xf32>,
    return
  }
  func.func @transform_0(%arg0: i32) -> (i32, i32) {
    %c0_i32 = arith.constant 0 : i32
    %c0_i32_0 = arith.constant 0 : i32
    %c0_i32_1 = arith.constant 0 : i32
    return %c0_i32, %c0_i32_0 : i32, i32
  }
  func.func @transform_1(%arg0: i32) -> (i32, i32) {
    %c0_i32 = arith.constant 0 : i32
    %c0_i32_0 = arith.constant 0 : i32
    %c0_i32_1 = arith.constant 0 : i32
    return %c0_i32, %c0_i32_0 : i32, i32
  }
  func.func @transform_2(%arg0: i32) -> (i32, i32) {
    %c0_i32 = arith.constant 0 : i32
    %c0_i32_0 = arith.constant 0 : i32
    %c0_i32_1 = arith.constant 0 : i32
    return %c0_i32, %c0_i32_0 : i32, i32
  }
  func.func @transform_3(%arg0: i32) -> (i32, i32) {
    %c0_i32 = arith.constant 0 : i32
    %c0_i32_0 = arith.constant 0 : i32
    %c0_i32_1 = arith.constant 0 : i32
    return %c0_i32, %c0_i32_0 : i32, i32
  }
  func.func @transform_4(%arg0: i32) -> (i32, i32) {
    %c0_i32 = arith.constant 0 : i32
    %c0_i32_0 = arith.constant 0 : i32
    %c0_i32_1 = arith.constant 0 : i32
    return %c0_i32, %c0_i32_0 : i32, i32
  }
  func.func @transform_5(%arg0: i32) -> (i32, i32) {
    %c0_i32 = arith.constant 0 : i32
    %c0_i32_0 = arith.constant 0 : i32
    %c0_i32_1 = arith.constant 0 : i32
    return %c0_i32, %c0_i32_0 : i32, i32
  }
}

</mosaic_0001>

<llo_original>
// kernel: timestep_mixing_forward.1
$region0: #{timestep_mixing_forward.1}
  #allocation0 [shape = 'u32[]', space=smem, size = 0x4, offset = 0x4, fixed_abs, tag = 'smem constant byte address 0x4 - core index']
  #allocation1 [shape = 'u32[72,128]{1,0:T(1,128)}', space=vmem, size = 0x9000, scoped, tag = 'internal scratch']
  %s0 = inlined_call_operand.vmem [shape: f32[8,256], index: 0, kind: input, shape index: {}]
  %s1 = inlined_call_operand.vmem [shape: f32[2,256], index: 1, kind: input, shape index: {}]
  %s2 = inlined_call_operand.hbm [shape: bf16[256,256], index: 2, kind: input, shape index: {}]
  %s3 = inlined_call_operand.hbm [shape: bf16[256,256], index: 3, kind: input, shape index: {}]
  %s4 = inlined_call_operand.vmem [shape: f32[8,256], index: 4, kind: input, shape index: {}]
  %s5 = inlined_call_operand.vmem [shape: f32[8,256], index: 5, kind: output, shape index: {}]
  %s6 = sld [smem:[#allocation0]]
  $region38: #{timestep_mixing_forward.1} parent=0
    _
  %s8 = ssub.s32 1, %s6
  %s9 = scalar_select 0, %s8, %s6
  $region1: #{timestep_mixing_forward.1} parent=0
    #allocation2 [shape = 'u8[131072]{0}', space=vmem, size = 0x20000, scoped, tag = 'input window, operand 2, single buffered']
    #allocation3 [shape = 's32[1]{0}', space=sflag, size = 0x4, scoped, tag = 'scoped memory for timestep_mixing_forward.1']
    #allocation4 [shape = 'u8[131072]{0}', space=vmem, size = 0x20000, scoped, tag = 'input window, operand 3, single buffered']
    #allocation5 [shape = 's32[1]{0}', space=sflag, size = 0x4, scoped, tag = 'scoped memory for timestep_mixing_forward.1']
    %10 = vsyncpa [#allocation3], 0
    %11 = vsyncpa [#allocation5], 0
    // Predicated region
    $region2: #{timestep_mixing_forward.1} parent=1 // pred_check
      _
    $region3: #{timestep_mixing_forward.1} parent=1 // pred_check_branch
      %13 = sbr.rel (0) target = $region5
    $region4: #{timestep_mixing_forward.1} parent=1 // pred_region
      _
    $region5: #{timestep_mixing_forward.1} parent=1 // pred_fallthru
      _
    // Predicated region
    $region6: #{timestep_mixing_forward.1} parent=1 // pred_check
      _
    $region7: #{timestep_mixing_forward.1} parent=1 // pred_check_branch
      %15 = sbr.rel (0) target = $region9
    $region8: #{timestep_mixing_forward.1} parent=1 // pred_region
      _
    $region9: #{timestep_mixing_forward.1} parent=1 // pred_fallthru
      _
    // Predicated region
    $region10: #{timestep_mixing_forward.1} parent=1 // pred_check
      _
    $region11: #{timestep_mixing_forward.1} parent=1 // pred_check_branch
      %17 = sbr.rel (0) target = $region13
    $region12: #{timestep_mixing_forward.1} parent=1 // pred_region
      %19 = vsyncadd [#allocation3], 0
      %s20 = sshll.u32 %s2, 4
      %s21 = int_to_ptr.hbm [resolvable:$true] %s20
      %s22 = sshll.u32 [#allocation2], 4
      %s23 = int_to_ptr.vmem [resolvable:$true] %s22
      %28 = dma.hbm_to_vmem [thread:$0]  %s21, 4096, %s23, [#allocation3], 128, 128, 8
    $region13: #{timestep_mixing_forward.1} parent=1 // pred_fallthru
      _
    // Predicated region
    $region14: #{timestep_mixing_forward.1} parent=1 // pred_check
      _
    $region15: #{timestep_mixing_forward.1} parent=1 // pred_check_branch
      %30 = sbr.rel (0) target = $region17
    $region16: #{timestep_mixing_forward.1} parent=1 // pred_region
      %32 = vsyncadd [#allocation5], 0
      %s33 = sshll.u32 %s3, 4
      %s34 = int_to_ptr.hbm [resolvable:$true] %s33
      %s35 = sshll.u32 [#allocation4], 4
      %s36 = int_to_ptr.vmem [resolvable:$true] %s35
      %41 = dma.hbm_to_vmem [thread:$0]  %s34, 4096, %s36, [#allocation5], 128, 128, 8
    $region17: #{timestep_mixing_forward.1} parent=1 // pred_fallthru
      _
    // Predicated region
    $region18: #{timestep_mixing_forward.1} parent=1 // pred_check
      _
    $region19: #{timestep_mixing_forward.1} parent=1 // pred_check_branch
      %43 = sbr.rel (0) target = $region21
    $region20: #{timestep_mixing_forward.1} parent=1 // pred_region
      _
    $region21: #{timestep_mixing_forward.1} parent=1 // pred_fallthru
      _
    // Predicated region
    $region22: #{timestep_mixing_forward.1} parent=1 // pred_check
      _
    $region23: #{timestep_mixing_forward.1} parent=1 // pred_check_branch
      %45 = sbr.rel (0) target = $region25
    $region24: #{timestep_mixing_forward.1} parent=1 // pred_region
      %47 = dma.done [#allocation3], 4096
    $region25: #{timestep_mixing_forward.1} parent=1 // pred_fallthru
      _
    // Predicated region
    $region26: #{timestep_mixing_forward.1} parent=1 // pred_check
      _
    $region27: #{timestep_mixing_forward.1} parent=1 // pred_check_branch
      %49 = sbr.rel (0) target = $region29
    $region28: #{timestep_mixing_forward.1} parent=1 // pred_region
      %51 = dma.done [#allocation5], 4096
    $region29: #{timestep_mixing_forward.1} parent=1 // pred_fallthru
      _
    %v52 = vld [vmem:[%s4] sm:$0xff]
    %v53 = vld [vmem:[%s4 + $0x8] sm:$0xff]
    %v54 = vld [vmem:[%s1] sm:$0xf]
    %56 = vst [vmem:[#allocation1] ss:$4 sm:$0xff] %v54
    %v57 = vld.sshfl [vmem:[#allocation1] sm:$0xff pattern:$0x73625140]
    %v58 = vld.sshfl [vmem:[#allocation1 + $0x8] sm:$0xff pattern:$0x73625140]
    %v61 = vpack.c.bf16 %v57, %v57
    %v62 = vpack.c.bf16 %v58, %v58
    %v63 = vld [vmem:[#allocation2] sm:$0xff]
    %v64 = vld [vmem:[#allocation2 + $0x8] sm:$0xff]
    %v65 = vld [vmem:[#allocation2 + $0x10] sm:$0xff]
    %v66 = vld [vmem:[#allocation2 + $0x18] sm:$0xff]
    %v67 = vld [vmem:[#allocation2 + $0x20] sm:$0xff]
    %v68 = vld [vmem:[#allocation2 + $0x28] sm:$0xff]
    %v69 = vld [vmem:[#allocation2 + $0x30] sm:$0xff]
    %v70 = vld [vmem:[#allocation2 + $0x38] sm:$0xff]
    %v71 = vld [vmem:[#allocation2 + $0x40] sm:$0xff]
    %v72 = vld [vmem:[#allocation2 + $0x48] sm:$0xff]
    %v73 = vld [vmem:[#allocation2 + $0x50] sm:$0xff]
    %v74 = vld [vmem:[#allocation2 + $0x58] sm:$0xff]
    %v75 = vld [vmem:[#allocation2 + $0x60] sm:$0xff]
    %v76 = vld [vmem:[#allocation2 + $0x68] sm:$0xff]
    %v77 = vld [vmem:[#allocation2 + $0x70] sm:$0xff]
    %v78 = vld [vmem:[#allocation2 + $0x78] sm:$0xff]
    %v79 = vld [vmem:[#allocation2 + $0x80] sm:$0xff]
    %v80 = vld [vmem:[#allocation2 + $0x88] sm:$0xff]
    %v81 = vld [vmem:[#allocation2 + $0x90] sm:$0xff]
    %v82 = vld [vmem:[#allocation2 + $0x98] sm:$0xff]
    %v83 = vld [vmem:[#allocation2 + $0xa0] sm:$0xff]
    %v84 = vld [vmem:[#allocation2 + $0xa8] sm:$0xff]
    %v85 = vld [vmem:[#allocation2 + $0xb0] sm:$0xff]
    %v86 = vld [vmem:[#allocation2 + $0xb8] sm:$0xff]
    %v87 = vld [vmem:[#allocation2 + $0xc0] sm:$0xff]
    %v88 = vld [vmem:[#allocation2 + $0xc8] sm:$0xff]
    %v89 = vld [vmem:[#allocation2 + $0xd0] sm:$0xff]
    %v90 = vld [vmem:[#allocation2 + $0xd8] sm:$0xff]
    %v91 = vld [vmem:[#allocation2 + $0xe0] sm:$0xff]
    %v92 = vld [vmem:[#allocation2 + $0xe8] sm:$0xff]
    %v93 = vld [vmem:[#allocation2 + $0xf0] sm:$0xff]
    %v94 = vld [vmem:[#allocation2 + $0xf8] sm:$0xff]
    %v127 = vunpack.c.l.b16 %v63
    %v128 = vunpack.c.h.b16 %v63
    %v129 = vunpack.c.l.b16 %v64
    %v130 = vunpack.c.h.b16 %v64
    %v131 = vunpack.c.l.b16 %v65
    %v132 = vunpack.c.h.b16 %v65
    %v133 = vunpack.c.l.b16 %v66
    %v134 = vunpack.c.h.b16 %v66
    %v135 = vunpack.c.l.b16 %v67
    %v136 = vunpack.c.h.b16 %v67
    %v137 = vunpack.c.l.b16 %v68
    %v138 = vunpack.c.h.b16 %v68
    %v139 = vunpack.c.l.b16 %v69
    %v140 = vunpack.c.h.b16 %v69
    %v141 = vunpack.c.l.b16 %v70
    %v142 = vunpack.c.h.b16 %v70
    %v143 = vunpack.c.l.b16 %v71
    %v144 = vunpack.c.h.b16 %v71
    %v145 = vunpack.c.l.b16 %v72
    %v146 = vunpack.c.h.b16 %v72
    %v147 = vunpack.c.l.b16 %v73
    %v148 = vunpack.c.h.b16 %v73
    %v149 = vunpack.c.l.b16 %v74
    %v150 = vunpack.c.h.b16 %v74
    %v151 = vunpack.c.l.b16 %v75
    %v152 = vunpack.c.h.b16 %v75
    %v153 = vunpack.c.l.b16 %v76
    %v154 = vunpack.c.h.b16 %v76
    %v155 = vunpack.c.l.b16 %v77
    %v156 = vunpack.c.h.b16 %v77
    %v157 = vunpack.c.l.b16 %v78
    %v158 = vunpack.c.h.b16 %v78
    %v159 = vunpack.c.l.b16 %v79
    %v160 = vunpack.c.h.b16 %v79
    %v161 = vunpack.c.l.b16 %v80
    %v162 = vunpack.c.h.b16 %v80
    %v163 = vunpack.c.l.b16 %v81
    %v164 = vunpack.c.h.b16 %v81
    %v165 = vunpack.c.l.b16 %v82
    %v166 = vunpack.c.h.b16 %v82
    %v167 = vunpack.c.l.b16 %v83
    %v168 = vunpack.c.h.b16 %v83
    %v169 = vunpack.c.l.b16 %v84
    %v170 = vunpack.c.h.b16 %v84
    %v171 = vunpack.c.l.b16 %v85
    %v172 = vunpack.c.h.b16 %v85
    %v173 = vunpack.c.l.b16 %v86
    %v174 = vunpack.c.h.b16 %v86
    %v175 = vunpack.c.l.b16 %v87
    %v176 = vunpack.c.h.b16 %v87
    %v177 = vunpack.c.l.b16 %v88
    %v178 = vunpack.c.h.b16 %v88
    %v179 = vunpack.c.l.b16 %v89
    %v180 = vunpack.c.h.b16 %v89
    %v181 = vunpack.c.l.b16 %v90
    %v182 = vunpack.c.h.b16 %v90
    %v183 = vunpack.c.l.b16 %v91
    %v184 = vunpack.c.h.b16 %v91
    %v185 = vunpack.c.l.b16 %v92
    %v186 = vunpack.c.h.b16 %v92
    %v187 = vunpack.c.l.b16 %v93
    %v188 = vunpack.c.h.b16 %v93
    %v189 = vunpack.c.l.b16 %v94
    %v190 = vunpack.c.h.b16 %v94
    %v191 = vpack.c.b16 %v129, %v127
    %v192 = vpack.c.b16 %v130, %v128
    %v193 = vpack.c.b16 %v133, %v131
    %v194 = vpack.c.b16 %v134, %v132
    %v195 = vpack.c.b16 %v137, %v135
    %v196 = vpack.c.b16 %v138, %v136
    %v197 = vpack.c.b16 %v141, %v139
    %v198 = vpack.c.b16 %v142, %v140
    %v199 = vpack.c.b16 %v145, %v143
    %v200 = vpack.c.b16 %v146, %v144
    %v201 = vpack.c.b16 %v149, %v147
    %v202 = vpack.c.b16 %v150, %v148
    %v203 = vpack.c.b16 %v153, %v151
    %v204 = vpack.c.b16 %v154, %v152
    %v205 = vpack.c.b16 %v157, %v155
    %v206 = vpack.c.b16 %v158, %v156
    %v207 = vpack.c.b16 %v161, %v159
    %v208 = vpack.c.b16 %v162, %v160
    %v209 = vpack.c.b16 %v165, %v163
    %v210 = vpack.c.b16 %v166, %v164
    %v211 = vpack.c.b16 %v169, %v167
    %v212 = vpack.c.b16 %v170, %v168
    %v213 = vpack.c.b16 %v173, %v171
    %v214 = vpack.c.b16 %v174, %v172
    %v215 = vpack.c.b16 %v177, %v175
    %v216 = vpack.c.b16 %v178, %v176
    %v217 = vpack.c.b16 %v181, %v179
    %v218 = vpack.c.b16 %v182, %v180
    %v219 = vpack.c.b16 %v185, %v183
    %v220 = vpack.c.b16 %v186, %v184
    %v221 = vpack.c.b16 %v189, %v187
    %v222 = vpack.c.b16 %v190, %v188
    %255 = vmatpush.bf16.msra.mxu0 %v205
    %256 = vmatpush.bf16.msra.mxu0 %v203
    %257 = vmatpush.bf16.msra.mxu0 %v201
    %258 = vmatpush.bf16.msra.mxu0 %v199
    %259 = vmatpush.bf16.msra.mxu0 %v197
    %260 = vmatpush.bf16.msra.mxu0 %v195
    %261 = vmatpush.bf16.msra.mxu0 %v193
    %262 = vmatpush.bf16.msra.mxu0 %v191
    %263 = vmatmul.bf16.gmra.mxu0 %v61
    %v264 = vpop.f32.mrf.mxu0
    %v265 = vadd.f32 0.0, %v264
    %v266 = vpop.f32.mrf.mxu0
    %267 = vdwg.mxu0
    %268 = vmatpush.bf16.msra.mxu0 %v221
    %269 = vmatpush.bf16.msra.mxu0 %v219
    %270 = vmatpush.bf16.msra.mxu0 %v217
    %271 = vmatpush.bf16.msra.mxu0 %v215
    %272 = vmatpush.bf16.msra.mxu0 %v213
    %273 = vmatpush.bf16.msra.mxu0 %v211
    %274 = vmatpush.bf16.msra.mxu0 %v209
    %275 = vmatpush.bf16.msra.mxu0 %v207
    %276 = vmatmul.bf16.gmra.mxu0 %v62
    %v277 = vpop.f32.mrf.mxu0
    %v278 = vadd.f32 %v265, %v277
    %v279 = vpop.f32.mrf.mxu0
    %280 = vdwg.mxu0
    %281 = vmatpush.bf16.msra.mxu0 %v206
    %282 = vmatpush.bf16.msra.mxu0 %v204
    %283 = vmatpush.bf16.msra.mxu0 %v202
    %284 = vmatpush.bf16.msra.mxu0 %v200
    %285 = vmatpush.bf16.msra.mxu0 %v198
    %286 = vmatpush.bf16.msra.mxu0 %v196
    %287 = vmatpush.bf16.msra.mxu0 %v194
    %288 = vmatpush.bf16.msra.mxu0 %v192
    %289 = vmatmul.bf16.gmra.mxu0 %v61
    %v290 = vpop.f32.mrf.mxu0
    %v291 = vadd.f32 0.0, %v290
    %v292 = vpop.f32.mrf.mxu0
    %293 = vdwg.mxu0
    %294 = vmatpush.bf16.msra.mxu0 %v222
    %295 = vmatpush.bf16.msra.mxu0 %v220
    %296 = vmatpush.bf16.msra.mxu0 %v218
    %297 = vmatpush.bf16.msra.mxu0 %v216
    %298 = vmatpush.bf16.msra.mxu0 %v214
    %299 = vmatpush.bf16.msra.mxu0 %v212
    %300 = vmatpush.bf16.msra.mxu0 %v210
    %301 = vmatpush.bf16.msra.mxu0 %v208
    %302 = vmatmul.bf16.gmra.mxu0 %v62
    %v303 = vpop.f32.mrf.mxu0
    %v304 = vadd.f32 %v291, %v303
    %v305 = vpop.f32.mrf.mxu0
    %306 = vdwg.mxu0
    %v307 = vpack.c.bf16 %v278, %v278
    %v308 = vpack.c.bf16 %v304, %v304
    %v309 = vld [vmem:[#allocation4] sm:$0xff]
    %v310 = vld [vmem:[#allocation4 + $0x8] sm:$0xff]
    %v311 = vld [vmem:[#allocation4 + $0x10] sm:$0xff]
    %v312 = vld [vmem:[#allocation4 + $0x18] sm:$0xff]
    %v313 = vld [vmem:[#allocation4 + $0x20] sm:$0xff]
    %v314 = vld [vmem:[#allocation4 + $0x28] sm:$0xff]
    %v315 = vld [vmem:[#allocation4 + $0x30] sm:$0xff]
    %v316 = vld [vmem:[#allocation4 + $0x38] sm:$0xff]
    %v317 = vld [vmem:[#allocation4 + $0x40] sm:$0xff]
    %v318 = vld [vmem:[#allocation4 + $0x48] sm:$0xff]
    %v319 = vld [vmem:[#allocation4 + $0x50] sm:$0xff]
    %v320 = vld [vmem:[#allocation4 + $0x58] sm:$0xff]
    %v321 = vld [vmem:[#allocation4 + $0x60] sm:$0xff]
    %v322 = vld [vmem:[#allocation4 + $0x68] sm:$0xff]
    %v323 = vld [vmem:[#allocation4 + $0x70] sm:$0xff]
    %v324 = vld [vmem:[#allocation4 + $0x78] sm:$0xff]
    %v325 = vld [vmem:[#allocation4 + $0x80] sm:$0xff]
    %v326 = vld [vmem:[#allocation4 + $0x88] sm:$0xff]
    %v327 = vld [vmem:[#allocation4 + $0x90] sm:$0xff]
    %v328 = vld [vmem:[#allocation4 + $0x98] sm:$0xff]
    %v329 = vld [vmem:[#allocation4 + $0xa0] sm:$0xff]
    %v330 = vld [vmem:[#allocation4 + $0xa8] sm:$0xff]
    %v331 = vld [vmem:[#allocation4 + $0xb0] sm:$0xff]
    %v332 = vld [vmem:[#allocation4 + $0xb8] sm:$0xff]
    %v333 = vld [vmem:[#allocation4 + $0xc0] sm:$0xff]
    %v334 = vld [vmem:[#allocation4 + $0xc8] sm:$0xff]
    %v335 = vld [vmem:[#allocation4 + $0xd0] sm:$0xff]
    %v336 = vld [vmem:[#allocation4 + $0xd8] sm:$0xff]
    %v337 = vld [vmem:[#allocation4 + $0xe0] sm:$0xff]
    %v338 = vld [vmem:[#allocation4 + $0xe8] sm:$0xff]
    %v339 = vld [vmem:[#allocation4 + $0xf0] sm:$0xff]
    %v340 = vld [vmem:[#allocation4 + $0xf8] sm:$0xff]
    %v341 = vperm.slane %v52, 0
    %v342 = vperm.slane %v53, 0
    %v375 = vunpack.c.l.b16 %v309
    %v376 = vunpack.c.h.b16 %v309
    %v377 = vunpack.c.l.b16 %v310
    %v378 = vunpack.c.h.b16 %v310
    %v379 = vunpack.c.l.b16 %v311
    %v380 = vunpack.c.h.b16 %v311
    %v381 = vunpack.c.l.b16 %v312
    %v382 = vunpack.c.h.b16 %v312
    %v383 = vunpack.c.l.b16 %v313
    %v384 = vunpack.c.h.b16 %v313
    %v385 = vunpack.c.l.b16 %v314
    %v386 = vunpack.c.h.b16 %v314
    %v387 = vunpack.c.l.b16 %v315
    %v388 = vunpack.c.h.b16 %v315
    %v389 = vunpack.c.l.b16 %v316
    %v390 = vunpack.c.h.b16 %v316
    %v391 = vunpack.c.l.b16 %v317
    %v392 = vunpack.c.h.b16 %v317
    %v393 = vunpack.c.l.b16 %v318
    %v394 = vunpack.c.h.b16 %v318
    %v395 = vunpack.c.l.b16 %v319
    %v396 = vunpack.c.h.b16 %v319
    %v397 = vunpack.c.l.b16 %v320
    %v398 = vunpack.c.h.b16 %v320
    %v399 = vunpack.c.l.b16 %v321
    %v400 = vunpack.c.h.b16 %v321
    %v401 = vunpack.c.l.b16 %v322
    %v402 = vunpack.c.h.b16 %v322
    %v403 = vunpack.c.l.b16 %v323
    %v404 = vunpack.c.h.b16 %v323
    %v405 = vunpack.c.l.b16 %v324
    %v406 = vunpack.c.h.b16 %v324
    %v407 = vunpack.c.l.b16 %v325
    %v408 = vunpack.c.h.b16 %v325
    %v409 = vunpack.c.l.b16 %v326
    %v410 = vunpack.c.h.b16 %v326
    %v411 = vunpack.c.l.b16 %v327
    %v412 = vunpack.c.h.b16 %v327
    %v413 = vunpack.c.l.b16 %v328
    %v414 = vunpack.c.h.b16 %v328
    %v415 = vunpack.c.l.b16 %v329
    %v416 = vunpack.c.h.b16 %v329
    %v417 = vunpack.c.l.b16 %v330
    %v418 = vunpack.c.h.b16 %v330
    %v419 = vunpack.c.l.b16 %v331
    %v420 = vunpack.c.h.b16 %v331
    %v421 = vunpack.c.l.b16 %v332
    %v422 = vunpack.c.h.b16 %v332
    %v423 = vunpack.c.l.b16 %v333
    %v424 = vunpack.c.h.b16 %v333
    %v425 = vunpack.c.l.b16 %v334
    %v426 = vunpack.c.h.b16 %v334
    %v427 = vunpack.c.l.b16 %v335
    %v428 = vunpack.c.h.b16 %v335
    %v429 = vunpack.c.l.b16 %v336
    %v430 = vunpack.c.h.b16 %v336
    %v431 = vunpack.c.l.b16 %v337
    %v432 = vunpack.c.h.b16 %v337
    %v433 = vunpack.c.l.b16 %v338
    %v434 = vunpack.c.h.b16 %v338
    %v435 = vunpack.c.l.b16 %v339
    %v436 = vunpack.c.h.b16 %v339
    %v437 = vunpack.c.l.b16 %v340
    %v438 = vunpack.c.h.b16 %v340
    %v439 = vpack.c.b16 %v377, %v375
    %v440 = vpack.c.b16 %v378, %v376
    %v441 = vpack.c.b16 %v381, %v379
    %v442 = vpack.c.b16 %v382, %v380
    %v443 = vpack.c.b16 %v385, %v383
    %v444 = vpack.c.b16 %v386, %v384
    %v445 = vpack.c.b16 %v389, %v387
    %v446 = vpack.c.b16 %v390, %v388
    %v447 = vpack.c.b16 %v393, %v391
    %v448 = vpack.c.b16 %v394, %v392
    %v449 = vpack.c.b16 %v397, %v395
    %v450 = vpack.c.b16 %v398, %v396
    %v451 = vpack.c.b16 %v401, %v399
    %v452 = vpack.c.b16 %v402, %v400
    %v453 = vpack.c.b16 %v405, %v403
    %v454 = vpack.c.b16 %v406, %v404
    %v455 = vpack.c.b16 %v409, %v407
    %v456 = vpack.c.b16 %v410, %v408
    %v457 = vpack.c.b16 %v413, %v411
    %v458 = vpack.c.b16 %v414, %v412
    %v459 = vpack.c.b16 %v417, %v415
    %v460 = vpack.c.b16 %v418, %v416
    %v461 = vpack.c.b16 %v421, %v419
    %v462 = vpack.c.b16 %v422, %v420
    %v463 = vpack.c.b16 %v425, %v423
    %v464 = vpack.c.b16 %v426, %v424
    %v465 = vpack.c.b16 %v429, %v427
    %v466 = vpack.c.b16 %v430, %v428
    %v467 = vpack.c.b16 %v433, %v431
    %v468 = vpack.c.b16 %v434, %v432
    %v469 = vpack.c.b16 %v437, %v435
    %v470 = vpack.c.b16 %v438, %v436
    %503 = vmatpush.bf16.msra.mxu0 %v453
    %504 = vmatpush.bf16.msra.mxu0 %v451
    %505 = vmatpush.bf16.msra.mxu0 %v449
    %506 = vmatpush.bf16.msra.mxu0 %v447
    %507 = vmatpush.bf16.msra.mxu0 %v445
    %508 = vmatpush.bf16.msra.mxu0 %v443
    %509 = vmatpush.bf16.msra.mxu0 %v441
    %510 = vmatpush.bf16.msra.mxu0 %v439
    %511 = vmatmul.bf16.gmra.mxu0 %v307
    %v512 = vpop.f32.mrf.mxu0
    %v513 = vadd.f32 %v341, %v512
    %v514 = vpop.f32.mrf.mxu0
    %515 = vdwg.mxu0
    %516 = vmatpush.bf16.msra.mxu0 %v469
    %517 = vmatpush.bf16.msra.mxu0 %v467
    %518 = vmatpush.bf16.msra.mxu0 %v465
    %519 = vmatpush.bf16.msra.mxu0 %v463
    %520 = vmatpush.bf16.msra.mxu0 %v461
    %521 = vmatpush.bf16.msra.mxu0 %v459
    %522 = vmatpush.bf16.msra.mxu0 %v457
    %523 = vmatpush.bf16.msra.mxu0 %v455
    %524 = vmatmul.bf16.gmra.mxu0 %v308
    %v525 = vpop.f32.mrf.mxu0
    %v526 = vadd.f32 %v513, %v525
    %v527 = vpop.f32.mrf.mxu0
    %528 = vdwg.mxu0
    %529 = vmatpush.bf16.msra.mxu0 %v454
    %530 = vmatpush.bf16.msra.mxu0 %v452
    %531 = vmatpush.bf16.msra.mxu0 %v450
    %532 = vmatpush.bf16.msra.mxu0 %v448
    %533 = vmatpush.bf16.msra.mxu0 %v446
    %534 = vmatpush.bf16.msra.mxu0 %v444
    %535 = vmatpush.bf16.msra.mxu0 %v442
    %536 = vmatpush.bf16.msra.mxu0 %v440
    %537 = vmatmul.bf16.gmra.mxu0 %v307
    %v538 = vpop.f32.mrf.mxu0
    %v539 = vadd.f32 %v342, %v538
    %v540 = vpop.f32.mrf.mxu0
    %541 = vdwg.mxu0
    %542 = vmatpush.bf16.msra.mxu0 %v470
    %543 = vmatpush.bf16.msra.mxu0 %v468
    %544 = vmatpush.bf16.msra.mxu0 %v466
    %545 = vmatpush.bf16.msra.mxu0 %v464
    %546 = vmatpush.bf16.msra.mxu0 %v462
    %547 = vmatpush.bf16.msra.mxu0 %v460
    %548 = vmatpush.bf16.msra.mxu0 %v458
    %549 = vmatpush.bf16.msra.mxu0 %v456
    %550 = vmatmul.bf16.gmra.mxu0 %v308
    %v551 = vpop.f32.mrf.mxu0
    %v552 = vadd.f32 %v539, %v551
    %v553 = vpop.f32.mrf.mxu0
    %554 = vdwg.mxu0
    %v555 = vmul.f32 %v526, 0.5
    %v556 = vmul.f32 %v552, 0.5
    %v557 = vmul.f32 %v526, 0.70710677
    %v558 = vmul.f32 %v552, 0.70710677
    %v559 = vmul.f32 %v557, %v557
    %v560 = vmin.f32 16.0, %v559
    %v561 = vmul.f32 %v560, 2.1237322e-06
    %v562 = vadd.f32 %v561, 0.00028619796
    %v563 = vmul.f32 %v560, %v562
    %v564 = vadd.f32 %v563, 0.0036580483
    %v565 = vmul.f32 %v560, %v564
    %v566 = vadd.f32 %v565, 0.05243302
    %v567 = vmul.f32 %v560, %v566
    %v568 = vadd.f32 %v567, 0.18741608
    %v569 = vmul.f32 %v560, %v568
    %v570 = vadd.f32 %v569, 1.1283791
    %v571 = vmul.f32 %v557, %v570
    %v572 = vmul.f32 %v560, 3.8918573e-05
    %v573 = vadd.f32 %v572, 0.001143296
    %v574 = vmul.f32 %v560, %v573
    %v575 = vadd.f32 %v574, 0.014752088
    %v576 = vmul.f32 %v560, %v575
    %v577 = vadd.f32 %v576, 0.112945676
    %v578 = vmul.f32 %v560, %v577
    %v579 = vadd.f32 %v578, 0.4994258
    %v580 = vmul.f32 %v560, %v579
    %v581 = vadd.f32 %v580, 1.0
    %v582 = vrcp.pop %v581
    %v583 = vmul.f32 %v581, %v582
    %v584 = vsub.f32 1.0, %v583
    %v585 = vmul.f32 %v582, %v584
    %v586 = vadd.f32 %v582, %v585
    %vm587 = vweird.f32 %v581
    %vm588 = vweird.f32 %v582
    %vm589 = vmor %vm587, %vm588
    %v590 = vsel %vm589, %v582, %v586
    %v591 = vand.u32 2147483647, %v581
    %vm592 = vcmp.eq.f32.partialorder %v591, 8.507059e+37
    %v593 = vand.u32 %v581, 2147483648
    %v594 = vor.u32 1.1754944e-38, %v593
    %v595 = vsel %vm592, %v594, %v590
    %v596 = vmul.f32 %v571, %v595
    %v597 = vmin.f32 %v596, 1.0
    %v598 = vmax.f32 %v597, -1.0
    %v599 = vmul.f32 %v558, %v558
    %v600 = vmin.f32 16.0, %v599
    %v601 = vmul.f32 %v600, 2.1237322e-06
    %v602 = vadd.f32 %v601, 0.00028619796
    %v603 = vmul.f32 %v600, %v602
    %v604 = vadd.f32 %v603, 0.0036580483
    %v605 = vmul.f32 %v600, %v604
    %v606 = vadd.f32 %v605, 0.05243302
    %v607 = vmul.f32 %v600, %v606
    %v608 = vadd.f32 %v607, 0.18741608
    %v609 = vmul.f32 %v600, %v608
    %v610 = vadd.f32 %v609, 1.1283791
    %v611 = vmul.f32 %v558, %v610
    %v612 = vmul.f32 %v600, 3.8918573e-05
    %v613 = vadd.f32 %v612, 0.001143296
    %v614 = vmul.f32 %v600, %v613
    %v615 = vadd.f32 %v614, 0.014752088
    %v616 = vmul.f32 %v600, %v615
    %v617 = vadd.f32 %v616, 0.112945676
    %v618 = vmul.f32 %v600, %v617
    %v619 = vadd.f32 %v618, 0.4994258
    %v620 = vmul.f32 %v600, %v619
    %v621 = vadd.f32 %v620, 1.0
    %v622 = vrcp.pop %v621
    %v623 = vmul.f32 %v621, %v622
    %v624 = vsub.f32 1.0, %v623
    %v625 = vmul.f32 %v622, %v624
    %v626 = vadd.f32 %v622, %v625
    %vm627 = vweird.f32 %v621
    %vm628 = vweird.f32 %v622
    %vm629 = vmor %vm627, %vm628
    %v630 = vsel %vm629, %v622, %v626
    %v631 = vand.u32 2147483647, %v621
    %vm632 = vcmp.eq.f32.partialorder %v631, 8.507059e+37
    %v633 = vand.u32 %v621, 2147483648
    %v634 = vor.u32 1.1754944e-38, %v633
    %v635 = vsel %vm632, %v634, %v630
    %v636 = vmul.f32 %v611, %v635
    %v637 = vmin.f32 %v636, 1.0
    %v638 = vmax.f32 %v637, -1.0
    %v639 = vadd.f32 %v598, 1.0
    %v640 = vadd.f32 %v638, 1.0
    %v641 = vmul.f32 %v555, %v639
    %v642 = vmul.f32 %v556, %v640
    %v643 = vmul.f32 %v641, %v641
    %v644 = vmul.f32 %v642, %v642
    %vm645 = vcmask 1041408
    %v646 = vsel %vm645, %v643, 0.0
    %v647 = vsel %vm645, %v644, 0.0
    %v648 = vadd.f32 %v646, %v647
    %649 = vadd.xlane.f32.xlu0 %v648
    %v650 = vpop.xlane.xlu0 %649
    %v651 = vrsqrt.pop %v650
    %v652 = vmul.f32 %v651, %v650
    %v653 = vmul.f32 %v652, %v651
    %v654 = vmul.f32 0.5, %v653
    %v655 = vsub.f32 1.5, %v654
    %v656 = vmul.f32 %v651, %v655
    %v657 = vmul.f32 %v650, %v656
    %vm658 = vcmp.eq.f32.partialorder %v650, inf
    %v659 = vsel %vm658, %v650, %v657
    %vm660 = vcmp.eq.f32.partialorder %v650, 0.0
    %v661 = vand.u32 %v650, 2147483648
    %v662 = vsel %vm660, %v661, %v659
    %v663 = vadd.f32 %v662, 1e-06
    %v664 = vrcp.pop %v663
    %v665 = vmul.f32 %v662, %v664
    %v666 = vperm.slane %v665, 0
    %v667 = vmul.f32 %v52, %v666
    %v668 = vadd.f32 %v667, 1.0
    %670 = vrot.lane.b32.xlu0 %v668, 2
    %v671 = vpop.permute.xlu0 %670
    %v673 = vmul.f32 %v52, %v671
    %675 = vset.pattern.permute.xlu0 2
    %676 = vperm.xlu0 %675, %v673
    %v677 = vpop.permute.xlu0 %676
    %v679 = vperm.slane %v641, 0
    %v680 = vperm.slane %v642, 0
    %v681 = vmul.f32 %v677, %v679
    %v682 = vmul.f32 %v677, %v680
    %684 = vrot.lane.b32.xlu0 %v52, 1
    %v685 = vpop.permute.xlu0 %684
    %v687 = vmul.f32 %v52, %v685
    %689 = vset.pattern.permute.xlu0 2
    %690 = vperm.xlu0 %689, %v687
    %v691 = vpop.permute.xlu0 %690
    %v693 = vadd.f32 %v681, %v691
    %v694 = vadd.f32 %v682, %v691
    %v695 = vld [vmem:[%s0] sm:$0xf]
    %v696 = vld [vmem:[%s0 + $0x8] sm:$0xf]
    %v699 = vrot.slane %v695, 7
    %v700 = vrot.slane %v696, 7
    %v703 = vadd.f32 %v693, %v699
    %v704 = vadd.f32 %v694, %v700
    %v707 = vrot.slane %v703, 1
    %v708 = vrot.slane %v704, 1
    %711 = vst [vmem:[%s5] sm:$0xf] %v707
    %712 = vst [vmem:[%s5 + $0x8] sm:$0xf] %v708
    %v713 = vperm.slane %v665, 1
    %v714 = vmul.f32 %v52, %v713
    %v715 = vadd.f32 %v714, 1.0
    %717 = vrot.lane.b32.xlu0 %v715, 2
    %v718 = vpop.permute.xlu0 %717
    %v720 = vmul.f32 %v52, %v718
    %722 = vset.pattern.permute.xlu0 2
    %723 = vperm.xlu0 %722, %v720
    %v724 = vpop.permute.xlu0 %723
    %v726 = vperm.slane %v641, 1
    %v727 = vperm.slane %v642, 1
    %v728 = vmul.f32 %v724, %v726
    %v729 = vmul.f32 %v724, %v727
    %v730 = vadd.f32 %v728, %v691
    %v731 = vadd.f32 %v729, %v691
    %v732 = vld [vmem:[%s0] sm:$0xf0]
    %v733 = vld [vmem:[%s0 + $0x8] sm:$0xf0]
    %v736 = vrot.slane %v732, 3
    %v737 = vrot.slane %v733, 3
    %v740 = vadd.f32 %v730, %v736
    %v741 = vadd.f32 %v731, %v737
    %v744 = vrot.slane %v740, 5
    %v745 = vrot.slane %v741, 5
    %748 = vst [vmem:[%s5] sm:$0xf0] %v744
    %749 = vst [vmem:[%s5 + $0x8] sm:$0xf0] %v745
    // Predicated region
    $region30: #{timestep_mixing_forward.1} parent=1 // pred_check
      _
    $region31: #{timestep_mixing_forward.1} parent=1 // pred_check_branch
      %751 = sbr.rel (0) target = $region33
    $region32: #{timestep_mixing_forward.1} parent=1 // pred_region
      _
    $region33: #{timestep_mixing_forward.1} parent=1 // pred_fallthru
      _
    // Predicated region
    $region34: #{timestep_mixing_forward.1} parent=1 // pred_check
      _
    $region35: #{timestep_mixing_forward.1} parent=1 // pred_check_branch
      %753 = sbr.rel (0) target = $region37
    $region36: #{timestep_mixing_forward.1} parent=1 // pred_region
      _
    $region37: #{timestep_mixing_forward.1} parent=1 // pred_fallthru
      _
    %754 = vsyncpa [#allocation3], 1
    %755 = vsyncpa [#allocation5], 1

</llo_original>
